<compile_context>
chip_gen: v7x
topology: tpu7x:2x2x1
jax: 0.10.0
libtpu: 0.0.40
codegen_flags: <defaults>
</compile_context>

<pallas_src>
import functools

import jax
import jax.numpy as jnp
from jax.experimental import pallas as pl
from jax.experimental.pallas import tpu as pltpu
import numpy as np


def _build_pe_table(pad_size: int, embed: int) -> jnp.ndarray:
    """Reproduces the PyTorch __init__ pe table (float32)."""
    pos = np.arange(pad_size, dtype=np.float64)[:, None]            # [S, 1]
    i = np.arange(embed, dtype=np.int64)[None, :]                    # [1, E]
    angle = pos / np.power(10000.0, (i // 2) * 2.0 / embed)          # [S, E]
    pe = np.array(angle, dtype=np.float64)
    pe[:, 0::2] = np.sin(pe[:, 0::2])
    pe[:, 1::2] = np.cos(pe[:, 1::2])
    return jnp.asarray(pe, dtype=jnp.float32)


# ---------------------------------------------------------------------------
# Kernels
# ---------------------------------------------------------------------------
def _pe_add_kernel(x_ref, pe_ref, o_ref):
    # x_ref: (tb, tn)   pe_ref: (1, tn)  -> broadcast over the batch rows.
    o_ref[...] = (x_ref[...] + pe_ref[...]).astype(o_ref.dtype)


def _pe_add_dropout_kernel(x_ref, pe_ref, bits_ref, o_ref, *, threshold, scale):
    out = x_ref[...] + pe_ref[...]
    # Integer threshold compare on raw uint32 bits: P(keep) = 1 - p.
    keep = bits_ref[...] >= jnp.uint32(threshold)
    out = jnp.where(keep, out * jnp.float32(scale), jnp.zeros_like(out))
    o_ref[...] = out.astype(o_ref.dtype)


# ---------------------------------------------------------------------------
# Tiling helper
# ---------------------------------------------------------------------------
def _choose_tiles(B: int, SE: int, block_bytes: int = 2 * 1024 * 1024):
    """Pick (row_tile, col_tile) for the [B, S*E] layout.

    Column tile is lane-dense (multiple of 128, or the full dim) and divides
    SE; row tile divides B.  Target ~block_bytes per f32 block so the
    double-buffered in/out (+ dropout bits) footprint stays far below the
    32 MiB scoped-VMEM default on all generations.
    """
    elems = max(128, block_bytes // 4)                      # f32 elems / block
    if SE % 128 != 0:
        tn = SE                                             # full dim (allowed)
    else:
        tn = min(SE, max(128, (elems // max(B, 1)) // 128 * 128))
        while SE % tn != 0:
            tn -= 128
    tb = B
    if B % 8 == 0 and B * tn > elems:
        tb = max(8, min(B, (elems // max(tn, 1)) // 8 * 8))
        while B % tb != 0:
            tb -= 8
        tb = max(tb, 8)
    return tb, tn


# ---------------------------------------------------------------------------
# Wrapper
# ---------------------------------------------------------------------------
def positional_encoding(x: jnp.ndarray,
                        pe: jnp.ndarray,
                        *,
                        dropout_p: float = 0.1,
                        training: bool = False,
                        rng_key=None) -> jnp.ndarray:
    """out = dropout(x + pe) computed in a Pallas TPU kernel.

    x  : [B, S, E] float32
    pe : [S, E]    float32
    """
    B, S, E = x.shape
    assert pe.shape == (S, E)
    SE = S * E

    # Lane-dense 2-D layout.
    x2 = x.reshape(B, SE)
    pe2 = pe.reshape(1, SE)

    tb, tn = _choose_tiles(B, SE)
    grid = (B // tb, SE // tn)

    x_spec = pl.BlockSpec((tb, tn), lambda b, n: (b, n))
    pe_spec = pl.BlockSpec((1, tn), lambda b, n: (0, n))
    out_spec = pl.BlockSpec((tb, tn), lambda b, n: (b, n))

    use_dropout = training and dropout_p > 0.0
    if use_dropout:
        if rng_key is None:
            rng_key = jax.random.PRNGKey(0)
        bits = jax.random.bits(rng_key, (B, SE), dtype=jnp.uint32)
        threshold = int(round(dropout_p * 4294967296.0))
        scale = 1.0 / (1.0 - dropout_p)
        kernel = functools.partial(_pe_add_dropout_kernel,
                                   threshold=threshold, scale=scale)
        in_specs = [x_spec, pe_spec, pl.BlockSpec((tb, tn), lambda b, n: (b, n))]
        args = (x2, pe2, bits)
        bytes_accessed = (2 * B * SE + SE + B * SE) * 4
        flops = 3 * B * SE
    else:
        kernel = _pe_add_kernel
        in_specs = [x_spec, pe_spec]
        args = (x2, pe2)
        bytes_accessed = (2 * B * SE + SE) * 4
        flops = B * SE

    out2 = pl.pallas_call(
        kernel,
        out_shape=jax.ShapeDtypeStruct((B, SE), x.dtype),
        grid=grid,
        in_specs=in_specs,
        out_specs=out_spec,
        compiler_params=pltpu.CompilerParams(
            dimension_semantics=("parallel", "parallel"),
            vmem_limit_bytes=32 * 1024 * 1024,
        ),
        cost_estimate=pl.CostEstimate(
            flops=flops, transcendentals=0, bytes_accessed=bytes_accessed),
    )(*args)

    return out2.reshape(B, S, E)


# ---------------------------------------------------------------------------
# Demo / correctness check
# ---------------------------------------------------------------------------
if __name__ == "__main__":
    # Small shapes consistent with the module: batch=2, pad_size(seq)=8, embed=32
    B, S, E = 2, 8, 32
    dropout_p = 0.1

    key = jax.random.PRNGKey(0)
    kx, kd = jax.random.split(key)
    x = jax.random.normal(kx, (B, S, E), dtype=jnp.float32)
    pe = _build_pe_table(S, E)

    # Eval-mode forward (dropout is identity), matching nn.Dropout in .eval().
    out = positional_encoding(x, pe, dropout_p=dropout_p, training=False)
    out = jax.block_until_ready(out)

    ref = x + pe[None, :, :]
    np.testing.assert_allclose(np.asarray(out), np.asarray(ref),
                               rtol=1e-6, atol=1e-6)

    # Training path: inverted dropout via integer-threshold compare on bits.
    out_tr = positional_encoding(x, pe, dropout_p=dropout_p,
                                 training=True, rng_key=kd)
    out_tr = jax.block_until_ready(out_tr)

    out_tr_np = np.asarray(out_tr)
    ref_np = np.asarray(ref)
    scale = 1.0 / (1.0 - dropout_p)
    kept = out_tr_np != 0.0
    # Every kept element must equal (x + pe) / (1 - p); dropped elements are 0.
    np.testing.assert_allclose(out_tr_np[kept], (ref_np * scale)[kept],
                               rtol=1e-5, atol=1e-5)

    print("KERNEL_OK")
</pallas_src>

<mosaic_0001>
module attributes {stable_mosaic.version = 11 : i64} {
  func.func @_pe_add_kernel(%arg0: i32, %arg1: i32, %arg2: memref<2x256xf32, #tpu.memory_space<vmem>>, %arg3: memref<1x256xf32, #tpu.memory_space<vmem>>, %arg4: memref<2x256xf32, #tpu.memory_space<vmem>>) attributes {dimension_semantics = [#tpu.dimension_semantics<parallel>, #tpu.dimension_semantics<parallel>], iteration_bounds = array<i64: 1, 1>, scalar_prefetch = 0 : i64, scratch_operands = 0 : i64, tpu.core_type = #tpu.core_type<tc>, window_params = [{transform_indices = @transform_0, window_bounds = array<i64: 2, 256>}, {transform_indices = @transform_1, window_bounds = array<i64: 1, 256>}, {transform_indices = @transform_2, window_bounds = array<i64: 2, 256>}]} {
    %c0 = arith.constant 0 : index
    %c0_0 = arith.constant 0 : index
    %0 = vector.load %arg2[%c0, %c0_0] : memref<2x256xf32, #tpu.memory_space<vmem>>, vector<2x256xf32>
    %c0_1 = arith.constant 0 : index
    %c0_2 = arith.constant 0 : index
    %1 = vector.load %arg3[%c0_1, %c0_2] : memref<1x256xf32, #tpu.memory_space<vmem>>, vector<1x256xf32>
    %2 = vector.broadcast %1 : vector<1x256xf32> to vector<2x256xf32>
    %3 = arith.addf %0, %2 : vector<2x256xf32>
    %c0_3 = arith.constant 0 : index
    %c0_4 = arith.constant 0 : index
    %4 = vector.load %arg4[%c0_3, %c0_4] : memref<2x256xf32, #tpu.memory_space<vmem>>, vector<2x256xf32>
    tpu.vector_store %arg4[%c0_3, %c0_4], %3 {strides = array<i32>} : memref<2x256xf32, #tpu.memory_space<vmem>>, vector<2x256xf32>,
    return
  }
  func.func @transform_0(%arg0: i32, %arg1: i32) -> (i32, i32) {
    %c0_i32 = arith.constant 0 : i32
    return %arg0, %arg1 : i32, i32
  }
  func.func @transform_1(%arg0: i32, %arg1: i32) -> (i32, i32) {
    %c0_i32 = arith.constant 0 : i32
    %c0_i32_0 = arith.constant 0 : i32
    return %c0_i32, %arg1 : i32, i32
  }
  func.func @transform_2(%arg0: i32, %arg1: i32) -> (i32, i32) {
    %c0_i32 = arith.constant 0 : i32
    return %arg0, %arg1 : i32, i32
  }
}

</mosaic_0001>

<llo_original>
// kernel: tpu_custom_call.1
$region0: #{tpu_custom_call.1}
  #allocation0 [shape = 'u32[]', space=smem, size = 0x4, offset = 0x4, fixed_abs, tag = 'smem constant byte address 0x4 - core index']
  #allocation1 [shape = 'u32[144,128]{1,0:T(1,128)}', space=vmem, size = 0x12000, scoped, tag = 'internal scratch']
  %s0 = inlined_call_operand.hbm [shape: f32[2,256], index: 0, kind: input, shape index: {}]
  %s1 = inlined_call_operand.vmem [shape: f32[1,256], index: 1, kind: input, shape index: {}]
  %s2 = inlined_call_operand.hbm [shape: f32[2,256], index: 2, kind: output, shape index: {}]
  %s3 = sld [smem:[#allocation0]]
  $region22: #{tpu_custom_call.1} parent=0
    _
  %s5 = ssub.s32 1, %s3
  %s6 = scalar_select 0, %s5, %s3
  $region1: #{tpu_custom_call.1} parent=0
    #allocation2 [shape = 'u8[2048]{0}', space=vmem, size = 0x800, scoped, tag = 'input window, operand 0, single buffered']
    #allocation3 [shape = 's32[1]{0}', space=sflag, size = 0x4, scoped, tag = 'scoped memory for tpu_custom_call.1']
    #allocation4 [shape = 's32[1]{0}', space=sflag, size = 0x4, scoped, tag = 'scoped memory for tpu_custom_call.1']
    #allocation5 [shape = 'u8[2048]{0}', space=vmem, size = 0x800, scoped, tag = 'output window, operand 0, single buffered']
    %7 = vsyncpa [#allocation3], 0
    %8 = vsyncpa [#allocation4], 0
    // Predicated region
    $region2: #{tpu_custom_call.1} parent=1 // pred_check
      _
    $region3: #{tpu_custom_call.1} parent=1 // pred_check_branch
      %10 = sbr.rel (0) target = $region5
    $region4: #{tpu_custom_call.1} parent=1 // pred_region
      %s12 = ssub.s32 64, 64
      %13 = vsyncadd [#allocation3], %s12
      %s15 = sshll.u32 [#allocation2], 4
      %s16 = int_to_ptr.vmem [resolvable:$true] %s15
      %18 = dma.hbm_to_vmem [thread:$0]  %s0, 64, %s16, [#allocation3]
    $region5: #{tpu_custom_call.1} parent=1 // pred_fallthru
      _
    // Predicated region
    $region6: #{tpu_custom_call.1} parent=1 // pred_check
      _
    $region7: #{tpu_custom_call.1} parent=1 // pred_check_branch
      %20 = sbr.rel (0) target = $region9
    $region8: #{tpu_custom_call.1} parent=1 // pred_region
      _
    $region9: #{tpu_custom_call.1} parent=1 // pred_fallthru
      _
    // Predicated region
    $region10: #{tpu_custom_call.1} parent=1 // pred_check
      _
    $region11: #{tpu_custom_call.1} parent=1 // pred_check_branch
      %22 = sbr.rel (0) target = $region13
    $region12: #{tpu_custom_call.1} parent=1 // pred_region
      %23 = dma.done [#allocation3], 64
    $region13: #{tpu_custom_call.1} parent=1 // pred_fallthru
      _
    %v24 = vld [vmem:[#allocation2] sm:$0xf]
    %v25 = vld [vmem:[%s1] sm:$0x3]
    %v27 = vlaneseq
    %v28 = vshrl.u32 %v27, 7
    %v29 = vsub.s32 0, %v28
    %v30 = vrot.slane %v25, %v29
    %v31 = vlaneseq
    %v32 = vshrl.u32 %v31, 7
    %v33 = vsub.s32 1, %v32
    %v34 = vrot.slane %v25, %v33
    %v35 = vcombine.low %v30, %v34
    %v37 = vunpack.c.l.s4 1983009808
    %v38 = vunpack.c.0.s8 %v37
    %v39 = vlaneseq
    %v40 = vshrl.u32 %v39, 7
    %v41 = vsub.s32 %v38, %v40
    %v42 = vrot.slane %v35, %v41
    %v44 = vadd.f32 %v24, %v42
    %45 = vst [vmem:[#allocation5] sm:$0xf] %v44
    // Predicated region
    $region14: #{tpu_custom_call.1} parent=1 // pred_check
      _
    $region15: #{tpu_custom_call.1} parent=1 // pred_check_branch
      %47 = sbr.rel (0) target = $region17
    $region16: #{tpu_custom_call.1} parent=1 // pred_region
      %s49 = ssub.s32 64, 64
      %50 = vsyncadd [#allocation4], %s49
      %s52 = sshll.u32 [#allocation5], 4
      %s53 = int_to_ptr.vmem [resolvable:$true] %s52
      %55 = dma.vmem_to_hbm [thread:$0]  %s53, 64, %s2, [#allocation4]
    $region17: #{tpu_custom_call.1} parent=1 // pred_fallthru
      _
    // Predicated region
    $region18: #{tpu_custom_call.1} parent=1 // pred_check
      _
    $region19: #{tpu_custom_call.1} parent=1 // pred_check_branch
      %57 = sbr.rel (0) target = $region21
    $region20: #{tpu_custom_call.1} parent=1 // pred_region
      %58 = dma.done [#allocation4], 64
    $region21: #{tpu_custom_call.1} parent=1 // pred_fallthru
      _
    %59 = vsyncpa [#allocation3], 1
    %60 = vsyncpa [#allocation4], 1

</llo_original>
